<compile_context>
chip_gen: v7x
topology: tpu7x:2x2x1
jax: 0.10.0
libtpu: 0.0.40
codegen_flags: <defaults>
</compile_context>

<pallas_src>
import functools

import numpy as np
import jax
import jax.numpy as jnp
from jax.experimental import pallas as pl
from jax.experimental.pallas import tpu as pltpu


def _round_up(x: int, m: int) -> int:
    return (x + m - 1) // m * m


def _istft_matmul_kernel(x_ref, basis_ref, out_ref):
    # x_ref    : (TM, K=4F)   bf16  stacked spectrogram rows [re[t+1]|im[t+1]|re[t]|im[t]]
    # basis_ref: (K, Npad)    bf16  fused iSTFT basis (iDFT, window, 1/N, overlap-add
    #                               split and NOLA envelope normalization folded in)
    # out_ref  : (TM, Npad)   f32   hop-wide waveform segments (lane-dense, Npad%128==0)
    out_ref[...] = jnp.dot(
        x_ref[...], basis_ref[...], preferred_element_type=jnp.float32
    )


def _make_fused_basis(n_fft: int, n_pad: int) -> jax.Array:
    """Fused (4F, n_pad) basis.

    Contraction-dim row layout (matches the wrapper's LHS stacking):
        [ re[t+1] (F) | im[t+1] (F) | re[t] (F) | im[t] (F) ]
    Output column j (< hop) then equals the trimmed iSTFT overlap-add sample
        (frame[t+1][j] + frame[t][j + hop]) / (win^2[j] + win^2[j + hop]).
    """
    n_freq = n_fft // 2 + 1
    hop = n_fft // 2
    assert 2 * hop == n_fft, "overlap-add/NOLA path assumes hop == n_fft // 2"

    k = np.arange(n_freq, dtype=np.float64)[:, None]
    n = np.arange(n_fft, dtype=np.float64)[None, :]
    scale = np.where((k == 0) | (k == n_fft // 2), 1.0, 2.0)
    win = 0.5 * (1.0 - np.cos(2.0 * np.pi * np.arange(n_fft) / n_fft))  # periodic Hann
    ang = 2.0 * np.pi * k * n / n_fft
    cos_b = (scale * np.cos(ang) / n_fft) * win[None, :]   # (F, n_fft)
    sin_b = (-scale * np.sin(ang) / n_fft) * win[None, :]  # (F, n_fft)

    env = win[:hop] ** 2 + win[hop:] ** 2                  # > 0 everywhere (NOLA holds)
    assert np.all(env > 1e-8), "NOLA violated for this window/hop combination"
    inv_env = 1.0 / env                                    # (hop,)

    basis = np.zeros((4 * n_freq, n_pad), dtype=np.float64)
    basis[0 * n_freq:1 * n_freq, :hop] = cos_b[:, :hop] * inv_env   # re[t+1] -> low half
    basis[1 * n_freq:2 * n_freq, :hop] = sin_b[:, :hop] * inv_env   # im[t+1] -> low half
    basis[2 * n_freq:3 * n_freq, :hop] = cos_b[:, hop:] * inv_env   # re[t]   -> high half
    basis[3 * n_freq:4 * n_freq, :hop] = sin_b[:, hop:] * inv_env   # im[t]   -> high half
    return jnp.asarray(basis, jnp.bfloat16)


def _choose_tiling(m_rows: int, tm_cap: int = 2048) -> tuple[int, int, int]:
    """Pick (tm, m_pad, n_steps).

    tm is a multiple of 128 and <= tm_cap (HBM-bound kernel: big tiles amortize the
    ~0.35us per-grid-step cost).  For m_rows >= 256 the step count is always EVEN so
    v7x's two TensorCores get balanced shards of the single "parallel" grid axis.
    """
    if m_rows < 256:
        tm = _round_up(max(m_rows, 1), 128)
        return tm, tm, 1
    pairs = -(-m_rows // (2 * tm_cap))      # ceil(m_rows / (2*cap))
    n_steps = 2 * pairs
    tm = _round_up(-(-m_rows // n_steps), 128)
    return tm, tm * n_steps, n_steps


@functools.partial(jax.jit, static_argnames=("n_fft",))
def post_processing(spec_re: jax.Array, spec_im: jax.Array, n_fft: int = 480) -> jax.Array:
    """Equivalent of PostProcessing.forward for a complex spec of shape (B, F, T)."""
    B, F, T = spec_re.shape
    hop = n_fft // 2
    assert F == n_fft // 2 + 1, "freq dim must be n_fft//2 + 1 (onesided)"
    assert T >= 2, "need at least 2 frames for a non-empty istft output"
    assert 2 * hop == n_fft

    n_pad = _round_up(hop, 128)        # 240 -> 256 : lane-dense output stores
    k_dim = 4 * F                      # 964: kept unpadded (full-dim block is legal)

    basis = _make_fused_basis(n_fft, n_pad)                 # (964, 256) bf16

    # Stack [re[t+1] | im[t+1] | re[t] | im[t]] along the contraction dim so the kernel
    # is one matmul with no in-kernel offset-240 slices or envelope multiply.  Built in
    # bf16 end-to-end so the materialized (M, 4F) prologue array costs half the HBM
    # traffic of the previous f32 version.
    re_b = jnp.transpose(spec_re.astype(jnp.bfloat16), (0, 2, 1))   # (B, T, F) bf16
    im_b = jnp.transpose(spec_im.astype(jnp.bfloat16), (0, 2, 1))   # (B, T, F) bf16
    x = jnp.concatenate(
        [re_b[:, 1:, :], im_b[:, 1:, :], re_b[:, :-1, :], im_b[:, :-1, :]], axis=-1
    )                                                               # (B, T-1, 4F) bf16

    m_rows = B * (T - 1)
    x = x.reshape(m_rows, k_dim)

    tm, m_pad, n_steps = _choose_tiling(m_rows)
    x = jnp.pad(x, ((0, m_pad - m_rows), (0, 0)))                   # rows only, bf16

    cost = pl.CostEstimate(
        flops=2 * m_pad * k_dim * n_pad,
        bytes_accessed=m_pad * k_dim * 2 + k_dim * n_pad * 2 + m_pad * n_pad * 4,
        transcendentals=0,
    )

    out = pl.pallas_call(
        _istft_matmul_kernel,
        out_shape=jax.ShapeDtypeStruct((m_pad, n_pad), jnp.float32),
        grid=(n_steps,),
        in_specs=[
            pl.BlockSpec((tm, k_dim), lambda i: (i, 0)),
            pl.BlockSpec((k_dim, n_pad), lambda i: (0, 0)),
        ],
        out_specs=pl.BlockSpec((tm, n_pad), lambda i: (i, 0)),
        compiler_params=pltpu.CompilerParams(
            dimension_semantics=("parallel",),
            # TM=2048 double-buffered pipeline is ~12.5 MiB: above v5e's 16 MiB scoped
            # default, comfortably below physical VMEM on v5e/v6e (128 MiB) and v7x (64).
            vmem_limit_bytes=32 * 1024 * 1024,
        ),
        cost_estimate=cost,
    )(x, basis)

    # Crop row padding + lane padding, then flatten segments to the waveform.
    wav = out[:m_rows, :hop].reshape(B, (T - 1) * hop)

    # torchaudio Resample(16000 -> 16000) is an identity; nothing more to do.
    return wav


def _reference_istft(spec_c: np.ndarray, n_fft: int) -> np.ndarray:
    """NumPy reference of torch.istft (center=True, onesided, hann, hop=n_fft//2)."""
    B, F, T = spec_c.shape
    hop = n_fft // 2
    win = 0.5 * (1.0 - np.cos(2.0 * np.pi * np.arange(n_fft) / n_fft))
    out_len = n_fft + hop * (T - 1)
    ys = np.zeros((B, out_len), dtype=np.float64)
    env = np.zeros(out_len, dtype=np.float64)
    for t in range(T):
        env[t * hop : t * hop + n_fft] += win**2
    for b in range(B):
        for t in range(T):
            frame = np.fft.irfft(spec_c[b, :, t], n=n_fft) * win
            ys[b, t * hop : t * hop + n_fft] += frame
    ys = ys[:, hop:-hop] / env[None, hop:-hop]  # trim n_fft//2 from both ends
    return ys


if __name__ == "__main__":
    # Module defaults imply n_fft = 2*30*16000//2000 = 480, hop = 240, F = 241.
    n_fft = 480
    F = n_fft // 2 + 1
    B, T = 2, 8  # small batch / frame count

    key = jax.random.PRNGKey(0)
    k_re, k_im = jax.random.split(key)
    spec_re = jax.random.normal(k_re, (B, F, T), dtype=jnp.float32)
    spec_im = jax.random.normal(k_im, (B, F, T), dtype=jnp.float32)

    wav = post_processing(spec_re, spec_im, n_fft=n_fft)
    wav = jax.block_until_ready(wav)

    assert wav.shape == (B, (T - 1) * (n_fft // 2)), wav.shape

    # Independent correctness check against a NumPy irfft + overlap-add reference.
    spec_c = np.asarray(spec_re, np.float64) + 1j * np.asarray(spec_im, np.float64)
    ref = _reference_istft(spec_c, n_fft)
    np.testing.assert_allclose(np.asarray(wav), ref, rtol=5e-3, atol=5e-3)

    print("KERNEL_OK")
</pallas_src>

<mosaic_0001>
module attributes {stable_mosaic.version = 11 : i64} {
  func.func @_istft_matmul_kernel(%arg0: i32, %arg1: memref<128x964xbf16, #tpu.memory_space<vmem>>, %arg2: memref<964x256xbf16, #tpu.memory_space<vmem>>, %arg3: memref<128x256xf32, #tpu.memory_space<vmem>>) attributes {dimension_semantics = [#tpu.dimension_semantics<parallel>], iteration_bounds = array<i64: 1>, scalar_prefetch = 0 : i64, scratch_operands = 0 : i64, tpu.core_type = #tpu.core_type<tc>, window_params = [{transform_indices = @transform_0, window_bounds = array<i64: 128, 964>}, {pipeline_mode = #tpu.pipeline_mode<synchronous>, transform_indices = @transform_1, window_bounds = array<i64: 964, 256>}, {transform_indices = @transform_2, window_bounds = array<i64: 128, 256>}]} {
    %c0 = arith.constant 0 : index
    %c0_0 = arith.constant 0 : index
    %0 = vector.load %arg1[%c0, %c0_0] : memref<128x964xbf16, #tpu.memory_space<vmem>>, vector<128x964xbf16>
    %c0_1 = arith.constant 0 : index
    %c0_2 = arith.constant 0 : index
    %1 = vector.load %arg2[%c0_1, %c0_2] : memref<964x256xbf16, #tpu.memory_space<vmem>>, vector<964x256xbf16>
    %cst = arith.constant dense<0.000000e+00> : vector<128x256xf32>
    %2 = tpu.matmul %0, %1, %cst {dimension_numbers = #tpu.dot_dimension_numbers<[1], [0], [0], [1], [0, 0, 1, 1], [], []>} : vector<128x964xbf16>, vector<964x256xbf16>, vector<128x256xf32> -> vector<128x256xf32>
    %c0_3 = arith.constant 0 : index
    %c0_4 = arith.constant 0 : index
    %3 = vector.load %arg3[%c0_3, %c0_4] : memref<128x256xf32, #tpu.memory_space<vmem>>, vector<128x256xf32>
    tpu.vector_store %arg3[%c0_3, %c0_4], %2 {strides = array<i32>} : memref<128x256xf32, #tpu.memory_space<vmem>>, vector<128x256xf32>,
    return
  }
  func.func @transform_0(%arg0: i32) -> (i32, i32) {
    %c0_i32 = arith.constant 0 : i32
    %c0_i32_0 = arith.constant 0 : i32
    return %arg0, %c0_i32 : i32, i32
  }
  func.func @transform_1(%arg0: i32) -> (i32, i32) {
    %c0_i32 = arith.constant 0 : i32
    %c0_i32_0 = arith.constant 0 : i32
    %c0_i32_1 = arith.constant 0 : i32
    return %c0_i32, %c0_i32_0 : i32, i32
  }
  func.func @transform_2(%arg0: i32) -> (i32, i32) {
    %c0_i32 = arith.constant 0 : i32
    %c0_i32_0 = arith.constant 0 : i32
    return %arg0, %c0_i32 : i32, i32
  }
}

</mosaic_0001>

<llo_original>
// kernel: post_processing.1
$region0: #{post_processing.1}
  #allocation0 [shape = 'u32[]', space=smem, size = 0x4, offset = 0x4, fixed_abs, tag = 'smem constant byte address 0x4 - core index']
  #allocation1 [shape = 'u32[144,128]{1,0:T(1,128)}', space=vmem, size = 0x12000, scoped, tag = 'internal scratch']
  %s0 = inlined_call_operand.vmem [shape: bf16[128,964], index: 0, kind: input, shape index: {}]
  %s1 = inlined_call_operand.vmem [shape: bf16[964,256], index: 1, kind: input, shape index: {}]
  %s2 = inlined_call_operand.vmem [shape: f32[128,256], index: 2, kind: output, shape index: {}]
  %s3 = sld [smem:[#allocation0]]
  $region18: #{post_processing.1} parent=0
    _
  %s5 = ssub.s32 1, %s3
  %s6 = scalar_select 0, %s5, %s3
  // Predicated region
  $region2: #{post_processing.1} parent=0 // pred_check
    _
  $region3: #{post_processing.1} parent=0 // pred_check_branch
    %8 = sbr.rel (0) target = $region5
  $region4: #{post_processing.1} parent=0 // pred_region
    _
  $region5: #{post_processing.1} parent=0 // pred_fallthru
    _
  // Predicated region
  $region6: #{post_processing.1} parent=0 // pred_check
    _
  $region7: #{post_processing.1} parent=0 // pred_check_branch
    %10 = sbr.rel (0) target = $region9
  $region8: #{post_processing.1} parent=0 // pred_region
    _
  $region9: #{post_processing.1} parent=0 // pred_fallthru
    _
  %v12 = vld [vmem:[%s0] sm:$0xff]
  %v13 = vld [vmem:[%s0 + $0x8] sm:$0xff]
  %v14 = vld [vmem:[%s0 + $0x10] sm:$0xff]
  %v15 = vld [vmem:[%s0 + $0x18] sm:$0xff]
  %v16 = vld [vmem:[%s0 + $0x20] sm:$0xff]
  %v17 = vld [vmem:[%s0 + $0x28] sm:$0xff]
  %v18 = vld [vmem:[%s0 + $0x30] sm:$0xff]
  %v19 = vld [vmem:[%s0 + $0x38] sm:$0xff]
  %v20 = vld [vmem:[%s0 + $0x40] sm:$0xff]
  %v21 = vld [vmem:[%s0 + $0x48] sm:$0xff]
  %v22 = vld [vmem:[%s0 + $0x50] sm:$0xff]
  %v23 = vld [vmem:[%s0 + $0x58] sm:$0xff]
  %v24 = vld [vmem:[%s0 + $0x60] sm:$0xff]
  %v25 = vld [vmem:[%s0 + $0x68] sm:$0xff]
  %v26 = vld [vmem:[%s0 + $0x70] sm:$0xff]
  %v27 = vld [vmem:[%s0 + $0x78] sm:$0xff]
  %v28 = vld [vmem:[%s0 + $0x80] sm:$0xff]
  %v29 = vld [vmem:[%s0 + $0x88] sm:$0xff]
  %v30 = vld [vmem:[%s0 + $0x90] sm:$0xff]
  %v31 = vld [vmem:[%s0 + $0x98] sm:$0xff]
  %v32 = vld [vmem:[%s0 + $0xa0] sm:$0xff]
  %v33 = vld [vmem:[%s0 + $0xa8] sm:$0xff]
  %v34 = vld [vmem:[%s0 + $0xb0] sm:$0xff]
  %v35 = vld [vmem:[%s0 + $0xb8] sm:$0xff]
  %v36 = vld [vmem:[%s0 + $0xc0] sm:$0xff]
  %v37 = vld [vmem:[%s0 + $0xc8] sm:$0xff]
  %v38 = vld [vmem:[%s0 + $0xd0] sm:$0xff]
  %v39 = vld [vmem:[%s0 + $0xd8] sm:$0xff]
  %v40 = vld [vmem:[%s0 + $0xe0] sm:$0xff]
  %v41 = vld [vmem:[%s0 + $0xe8] sm:$0xff]
  %v42 = vld [vmem:[%s0 + $0xf0] sm:$0xff]
  %v43 = vld [vmem:[%s0 + $0xf8] sm:$0xff]
  %v44 = vld [vmem:[%s0 + $0x100] sm:$0xff]
  %v45 = vld [vmem:[%s0 + $0x108] sm:$0xff]
  %v46 = vld [vmem:[%s0 + $0x110] sm:$0xff]
  %v47 = vld [vmem:[%s0 + $0x118] sm:$0xff]
  %v48 = vld [vmem:[%s0 + $0x120] sm:$0xff]
  %v49 = vld [vmem:[%s0 + $0x128] sm:$0xff]
  %v50 = vld [vmem:[%s0 + $0x130] sm:$0xff]
  %v51 = vld [vmem:[%s0 + $0x138] sm:$0xff]
  %v52 = vld [vmem:[%s0 + $0x140] sm:$0xff]
  %v53 = vld [vmem:[%s0 + $0x148] sm:$0xff]
  %v54 = vld [vmem:[%s0 + $0x150] sm:$0xff]
  %v55 = vld [vmem:[%s0 + $0x158] sm:$0xff]
  %v56 = vld [vmem:[%s0 + $0x160] sm:$0xff]
  %v57 = vld [vmem:[%s0 + $0x168] sm:$0xff]
  %v58 = vld [vmem:[%s0 + $0x170] sm:$0xff]
  %v59 = vld [vmem:[%s0 + $0x178] sm:$0xff]
  %v60 = vld [vmem:[%s0 + $0x180] sm:$0xff]
  %v61 = vld [vmem:[%s0 + $0x188] sm:$0xff]
  %v62 = vld [vmem:[%s0 + $0x190] sm:$0xff]
  %v63 = vld [vmem:[%s0 + $0x198] sm:$0xff]
  %v64 = vld [vmem:[%s0 + $0x1a0] sm:$0xff]
  %v65 = vld [vmem:[%s0 + $0x1a8] sm:$0xff]
  %v66 = vld [vmem:[%s0 + $0x1b0] sm:$0xff]
  %v67 = vld [vmem:[%s0 + $0x1b8] sm:$0xff]
  %v68 = vld [vmem:[%s0 + $0x1c0] sm:$0xff]
  %v69 = vld [vmem:[%s0 + $0x1c8] sm:$0xff]
  %v70 = vld [vmem:[%s0 + $0x1d0] sm:$0xff]
  %v71 = vld [vmem:[%s0 + $0x1d8] sm:$0xff]
  %v72 = vld [vmem:[%s0 + $0x1e0] sm:$0xff]
  %v73 = vld [vmem:[%s0 + $0x1e8] sm:$0xff]
  %v74 = vld [vmem:[%s0 + $0x1f0] sm:$0xff]
  %v75 = vld [vmem:[%s0 + $0x1f8] sm:$0xff]
  %v76 = vld [vmem:[%s1] sm:$0xff]
  %v77 = vld [vmem:[%s1 + $0x8] sm:$0xff]
  %v78 = vld [vmem:[%s1 + $0x10] sm:$0xff]
  %v79 = vld [vmem:[%s1 + $0x18] sm:$0xff]
  %v80 = vld [vmem:[%s1 + $0x20] sm:$0xff]
  %v81 = vld [vmem:[%s1 + $0x28] sm:$0xff]
  %v82 = vld [vmem:[%s1 + $0x30] sm:$0xff]
  %v83 = vld [vmem:[%s1 + $0x38] sm:$0xff]
  %v84 = vld [vmem:[%s1 + $0x40] sm:$0xff]
  %v85 = vld [vmem:[%s1 + $0x48] sm:$0xff]
  %v86 = vld [vmem:[%s1 + $0x50] sm:$0xff]
  %v87 = vld [vmem:[%s1 + $0x58] sm:$0xff]
  %v88 = vld [vmem:[%s1 + $0x60] sm:$0xff]
  %v89 = vld [vmem:[%s1 + $0x68] sm:$0xff]
  %v90 = vld [vmem:[%s1 + $0x70] sm:$0xff]
  %v91 = vld [vmem:[%s1 + $0x78] sm:$0xff]
  %v92 = vld [vmem:[%s1 + $0x80] sm:$0xff]
  %v93 = vld [vmem:[%s1 + $0x88] sm:$0xff]
  %v94 = vld [vmem:[%s1 + $0x90] sm:$0xff]
  %v95 = vld [vmem:[%s1 + $0x98] sm:$0xff]
  %v96 = vld [vmem:[%s1 + $0xa0] sm:$0xff]
  %v97 = vld [vmem:[%s1 + $0xa8] sm:$0xff]
  %v98 = vld [vmem:[%s1 + $0xb0] sm:$0xff]
  %v99 = vld [vmem:[%s1 + $0xb8] sm:$0xff]
  %v100 = vld [vmem:[%s1 + $0xc0] sm:$0xff]
  %v101 = vld [vmem:[%s1 + $0xc8] sm:$0xff]
  %v102 = vld [vmem:[%s1 + $0xd0] sm:$0xff]
  %v103 = vld [vmem:[%s1 + $0xd8] sm:$0xff]
  %v104 = vld [vmem:[%s1 + $0xe0] sm:$0xff]
  %v105 = vld [vmem:[%s1 + $0xe8] sm:$0xff]
  %v106 = vld [vmem:[%s1 + $0xf0] sm:$0xff]
  %v107 = vld [vmem:[%s1 + $0xf8] sm:$0xff]
  %v108 = vld [vmem:[%s1 + $0x100] sm:$0xff]
  %v109 = vld [vmem:[%s1 + $0x108] sm:$0xff]
  %v110 = vld [vmem:[%s1 + $0x110] sm:$0xff]
  %v111 = vld [vmem:[%s1 + $0x118] sm:$0xff]
  %v112 = vld [vmem:[%s1 + $0x120] sm:$0xff]
  %v113 = vld [vmem:[%s1 + $0x128] sm:$0xff]
  %v114 = vld [vmem:[%s1 + $0x130] sm:$0xff]
  %v115 = vld [vmem:[%s1 + $0x138] sm:$0xff]
  %v116 = vld [vmem:[%s1 + $0x140] sm:$0xff]
  %v117 = vld [vmem:[%s1 + $0x148] sm:$0xff]
  %v118 = vld [vmem:[%s1 + $0x150] sm:$0xff]
  %v119 = vld [vmem:[%s1 + $0x158] sm:$0xff]
  %v120 = vld [vmem:[%s1 + $0x160] sm:$0xff]
  %v121 = vld [vmem:[%s1 + $0x168] sm:$0xff]
  %v122 = vld [vmem:[%s1 + $0x170] sm:$0xff]
  %v123 = vld [vmem:[%s1 + $0x178] sm:$0xff]
  %v124 = vld [vmem:[%s1 + $0x180] sm:$0xff]
  %v125 = vld [vmem:[%s1 + $0x188] sm:$0xff]
  %v126 = vld [vmem:[%s1 + $0x190] sm:$0xff]
  %v127 = vld [vmem:[%s1 + $0x198] sm:$0xff]
  %v128 = vld [vmem:[%s1 + $0x1a0] sm:$0xff]
  %v129 = vld [vmem:[%s1 + $0x1a8] sm:$0xff]
  %v130 = vld [vmem:[%s1 + $0x1b0] sm:$0xff]
  %v131 = vld [vmem:[%s1 + $0x1b8] sm:$0xff]
  %v132 = vld [vmem:[%s1 + $0x1c0] sm:$0xff]
  %v133 = vld [vmem:[%s1 + $0x1c8] sm:$0xff]
  %v134 = vld [vmem:[%s1 + $0x1d0] sm:$0xff]
  %v135 = vld [vmem:[%s1 + $0x1d8] sm:$0xff]
  %v136 = vld [vmem:[%s1 + $0x1e0] sm:$0xff]
  %v137 = vld [vmem:[%s1 + $0x1e8] sm:$0xff]
  %v138 = vld [vmem:[%s1 + $0x1f0] sm:$0xff]
  %v139 = vld [vmem:[%s1 + $0x1f8] sm:$0xff]
  %v140 = vld [vmem:[%s1 + $0x200] sm:$0xff]
  %v141 = vld [vmem:[%s1 + $0x208] sm:$0xff]
  %v142 = vld [vmem:[%s1 + $0x210] sm:$0xff]
  %v143 = vld [vmem:[%s1 + $0x218] sm:$0xff]
  %v144 = vld [vmem:[%s1 + $0x220] sm:$0xff]
  %v145 = vld [vmem:[%s1 + $0x228] sm:$0xff]
  %v146 = vld [vmem:[%s1 + $0x230] sm:$0xff]
  %v147 = vld [vmem:[%s1 + $0x238] sm:$0xff]
  %v148 = vld [vmem:[%s1 + $0x240] sm:$0xff]
  %v149 = vld [vmem:[%s1 + $0x248] sm:$0xff]
  %v150 = vld [vmem:[%s1 + $0x250] sm:$0xff]
  %v151 = vld [vmem:[%s1 + $0x258] sm:$0xff]
  %v152 = vld [vmem:[%s1 + $0x260] sm:$0xff]
  %v153 = vld [vmem:[%s1 + $0x268] sm:$0xff]
  %v154 = vld [vmem:[%s1 + $0x270] sm:$0xff]
  %v155 = vld [vmem:[%s1 + $0x278] sm:$0xff]
  %v156 = vld [vmem:[%s1 + $0x280] sm:$0xff]
  %v157 = vld [vmem:[%s1 + $0x288] sm:$0xff]
  %v158 = vld [vmem:[%s1 + $0x290] sm:$0xff]
  %v159 = vld [vmem:[%s1 + $0x298] sm:$0xff]
  %v160 = vld [vmem:[%s1 + $0x2a0] sm:$0xff]
  %v161 = vld [vmem:[%s1 + $0x2a8] sm:$0xff]
  %v162 = vld [vmem:[%s1 + $0x2b0] sm:$0xff]
  %v163 = vld [vmem:[%s1 + $0x2b8] sm:$0xff]
  %v164 = vld [vmem:[%s1 + $0x2c0] sm:$0xff]
  %v165 = vld [vmem:[%s1 + $0x2c8] sm:$0xff]
  %v166 = vld [vmem:[%s1 + $0x2d0] sm:$0xff]
  %v167 = vld [vmem:[%s1 + $0x2d8] sm:$0xff]
  %v168 = vld [vmem:[%s1 + $0x2e0] sm:$0xff]
  %v169 = vld [vmem:[%s1 + $0x2e8] sm:$0xff]
  %v170 = vld [vmem:[%s1 + $0x2f0] sm:$0xff]
  %v171 = vld [vmem:[%s1 + $0x2f8] sm:$0xff]
  %v172 = vld [vmem:[%s1 + $0x300] sm:$0xff]
  %v173 = vld [vmem:[%s1 + $0x308] sm:$0xff]
  %v174 = vld [vmem:[%s1 + $0x310] sm:$0xff]
  %v175 = vld [vmem:[%s1 + $0x318] sm:$0xff]
  %v176 = vld [vmem:[%s1 + $0x320] sm:$0xff]
  %v177 = vld [vmem:[%s1 + $0x328] sm:$0xff]
  %v178 = vld [vmem:[%s1 + $0x330] sm:$0xff]
  %v179 = vld [vmem:[%s1 + $0x338] sm:$0xff]
  %v180 = vld [vmem:[%s1 + $0x340] sm:$0xff]
  %v181 = vld [vmem:[%s1 + $0x348] sm:$0xff]
  %v182 = vld [vmem:[%s1 + $0x350] sm:$0xff]
  %v183 = vld [vmem:[%s1 + $0x358] sm:$0xff]
  %v184 = vld [vmem:[%s1 + $0x360] sm:$0xff]
  %v185 = vld [vmem:[%s1 + $0x368] sm:$0xff]
  %v186 = vld [vmem:[%s1 + $0x370] sm:$0xff]
  %v187 = vld [vmem:[%s1 + $0x378] sm:$0xff]
  %v188 = vld [vmem:[%s1 + $0x380] sm:$0xff]
  %v189 = vld [vmem:[%s1 + $0x388] sm:$0xff]
  %v190 = vld [vmem:[%s1 + $0x390] sm:$0xff]
  %v191 = vld [vmem:[%s1 + $0x398] sm:$0xff]
  %v192 = vld [vmem:[%s1 + $0x3a0] sm:$0xff]
  %v193 = vld [vmem:[%s1 + $0x3a8] sm:$0xff]
  %v194 = vld [vmem:[%s1 + $0x3b0] sm:$0xff]
  %v195 = vld [vmem:[%s1 + $0x3b8] sm:$0xff]
  %v196 = vld [vmem:[%s1 + $0x3c0] sm:$0x33]
  %v261 = vunpack.c.l.b16 %v12
  %v262 = vunpack.c.h.b16 %v12
  %v263 = vunpack.c.l.b16 %v13
  %v264 = vunpack.c.h.b16 %v13
  %v265 = vunpack.c.l.b16 %v14
  %v266 = vunpack.c.h.b16 %v14
  %v267 = vunpack.c.l.b16 %v15
  %v268 = vunpack.c.h.b16 %v15
  %v269 = vunpack.c.l.b16 %v16
  %v270 = vunpack.c.h.b16 %v16
  %v271 = vunpack.c.l.b16 %v17
  %v272 = vunpack.c.h.b16 %v17
  %v273 = vunpack.c.l.b16 %v18
  %v274 = vunpack.c.h.b16 %v18
  %v275 = vunpack.c.l.b16 %v19
  %v276 = vunpack.c.h.b16 %v19
  %v277 = vunpack.c.l.b16 %v20
  %v278 = vunpack.c.h.b16 %v20
  %v279 = vunpack.c.l.b16 %v21
  %v280 = vunpack.c.h.b16 %v21
  %v281 = vunpack.c.l.b16 %v22
  %v282 = vunpack.c.h.b16 %v22
  %v283 = vunpack.c.l.b16 %v23
  %v284 = vunpack.c.h.b16 %v23
  %v285 = vunpack.c.l.b16 %v24
  %v286 = vunpack.c.h.b16 %v24
  %v287 = vunpack.c.l.b16 %v25
  %v288 = vunpack.c.h.b16 %v25
  %v289 = vunpack.c.l.b16 %v26
  %v290 = vunpack.c.h.b16 %v26
  %v291 = vunpack.c.l.b16 %v27
  %v292 = vunpack.c.h.b16 %v27
  %v293 = vunpack.c.l.b16 %v28
  %v294 = vunpack.c.h.b16 %v28
  %v295 = vunpack.c.l.b16 %v29
  %v296 = vunpack.c.h.b16 %v29
  %v297 = vunpack.c.l.b16 %v30
  %v298 = vunpack.c.h.b16 %v30
  %v299 = vunpack.c.l.b16 %v31
  %v300 = vunpack.c.h.b16 %v31
  %v301 = vunpack.c.l.b16 %v32
  %v302 = vunpack.c.h.b16 %v32
  %v303 = vunpack.c.l.b16 %v33
  %v304 = vunpack.c.h.b16 %v33
  %v305 = vunpack.c.l.b16 %v34
  %v306 = vunpack.c.h.b16 %v34
  %v307 = vunpack.c.l.b16 %v35
  %v308 = vunpack.c.h.b16 %v35
  %v309 = vunpack.c.l.b16 %v36
  %v310 = vunpack.c.h.b16 %v36
  %v311 = vunpack.c.l.b16 %v37
  %v312 = vunpack.c.h.b16 %v37
  %v313 = vunpack.c.l.b16 %v38
  %v314 = vunpack.c.h.b16 %v38
  %v315 = vunpack.c.l.b16 %v39
  %v316 = vunpack.c.h.b16 %v39
  %v317 = vunpack.c.l.b16 %v40
  %v318 = vunpack.c.h.b16 %v40
  %v319 = vunpack.c.l.b16 %v41
  %v320 = vunpack.c.h.b16 %v41
  %v321 = vunpack.c.l.b16 %v42
  %v322 = vunpack.c.h.b16 %v42
  %v323 = vunpack.c.l.b16 %v43
  %v324 = vunpack.c.h.b16 %v43
  %v325 = vunpack.c.l.b16 %v44
  %v326 = vunpack.c.h.b16 %v44
  %v327 = vunpack.c.l.b16 %v45
  %v328 = vunpack.c.h.b16 %v45
  %v329 = vunpack.c.l.b16 %v46
  %v330 = vunpack.c.h.b16 %v46
  %v331 = vunpack.c.l.b16 %v47
  %v332 = vunpack.c.h.b16 %v47
  %v333 = vunpack.c.l.b16 %v48
  %v334 = vunpack.c.h.b16 %v48
  %v335 = vunpack.c.l.b16 %v49
  %v336 = vunpack.c.h.b16 %v49
  %v337 = vunpack.c.l.b16 %v50
  %v338 = vunpack.c.h.b16 %v50
  %v339 = vunpack.c.l.b16 %v51
  %v340 = vunpack.c.h.b16 %v51
  %v341 = vunpack.c.l.b16 %v52
  %v342 = vunpack.c.h.b16 %v52
  %v343 = vunpack.c.l.b16 %v53
  %v344 = vunpack.c.h.b16 %v53
  %v345 = vunpack.c.l.b16 %v54
  %v346 = vunpack.c.h.b16 %v54
  %v347 = vunpack.c.l.b16 %v55
  %v348 = vunpack.c.h.b16 %v55
  %v349 = vunpack.c.l.b16 %v56
  %v350 = vunpack.c.h.b16 %v56
  %v351 = vunpack.c.l.b16 %v57
  %v352 = vunpack.c.h.b16 %v57
  %v353 = vunpack.c.l.b16 %v58
  %v354 = vunpack.c.h.b16 %v58
  %v355 = vunpack.c.l.b16 %v59
  %v356 = vunpack.c.h.b16 %v59
  %v357 = vunpack.c.l.b16 %v60
  %v358 = vunpack.c.h.b16 %v60
  %v359 = vunpack.c.l.b16 %v61
  %v360 = vunpack.c.h.b16 %v61
  %v361 = vunpack.c.l.b16 %v62
  %v362 = vunpack.c.h.b16 %v62
  %v363 = vunpack.c.l.b16 %v63
  %v364 = vunpack.c.h.b16 %v63
  %v365 = vunpack.c.l.b16 %v64
  %v366 = vunpack.c.h.b16 %v64
  %v367 = vunpack.c.l.b16 %v65
  %v368 = vunpack.c.h.b16 %v65
  %v369 = vunpack.c.l.b16 %v66
  %v370 = vunpack.c.h.b16 %v66
  %v371 = vunpack.c.l.b16 %v67
  %v372 = vunpack.c.h.b16 %v67
  %v373 = vunpack.c.l.b16 %v68
  %v374 = vunpack.c.h.b16 %v68
  %v375 = vunpack.c.l.b16 %v69
  %v376 = vunpack.c.h.b16 %v69
  %v377 = vunpack.c.l.b16 %v70
  %v378 = vunpack.c.h.b16 %v70
  %v379 = vunpack.c.l.b16 %v71
  %v380 = vunpack.c.h.b16 %v71
  %v381 = vunpack.c.l.b16 %v72
  %v382 = vunpack.c.h.b16 %v72
  %v383 = vunpack.c.l.b16 %v73
  %v384 = vunpack.c.h.b16 %v73
  %v385 = vunpack.c.l.b16 %v74
  %v386 = vunpack.c.h.b16 %v74
  %v387 = vunpack.c.l.b16 %v75
  %v388 = vunpack.c.h.b16 %v75
  %v389 = vpack.c.b16 %v269, %v261
  %v390 = vpack.c.b16 %v270, %v262
  %v391 = vpack.c.b16 %v271, %v263
  %v392 = vpack.c.b16 %v272, %v264
  %v393 = vpack.c.b16 %v273, %v265
  %v394 = vpack.c.b16 %v274, %v266
  %v395 = vpack.c.b16 %v275, %v267
  %v396 = vpack.c.b16 %v276, %v268
  %v397 = vpack.c.b16 %v285, %v277
  %v398 = vpack.c.b16 %v286, %v278
  %v399 = vpack.c.b16 %v287, %v279
  %v400 = vpack.c.b16 %v288, %v280
  %v401 = vpack.c.b16 %v289, %v281
  %v402 = vpack.c.b16 %v290, %v282
  %v403 = vpack.c.b16 %v291, %v283
  %v404 = vpack.c.b16 %v292, %v284
  %v405 = vpack.c.b16 %v301, %v293
  %v406 = vpack.c.b16 %v302, %v294
  %v407 = vpack.c.b16 %v303, %v295
  %v408 = vpack.c.b16 %v304, %v296
  %v409 = vpack.c.b16 %v305, %v297
  %v410 = vpack.c.b16 %v306, %v298
  %v411 = vpack.c.b16 %v307, %v299
  %v412 = vpack.c.b16 %v308, %v300
  %v413 = vpack.c.b16 %v317, %v309
  %v414 = vpack.c.b16 %v318, %v310
  %v415 = vpack.c.b16 %v319, %v311
  %v416 = vpack.c.b16 %v320, %v312
  %v417 = vpack.c.b16 %v321, %v313
  %v418 = vpack.c.b16 %v322, %v314
  %v419 = vpack.c.b16 %v323, %v315
  %v420 = vpack.c.b16 %v324, %v316
  %v421 = vpack.c.b16 %v333, %v325
  %v422 = vpack.c.b16 %v334, %v326
  %v423 = vpack.c.b16 %v335, %v327
  %v424 = vpack.c.b16 %v336, %v328
  %v425 = vpack.c.b16 %v337, %v329
  %v426 = vpack.c.b16 %v338, %v330
  %v427 = vpack.c.b16 %v339, %v331
  %v428 = vpack.c.b16 %v340, %v332
  %v429 = vpack.c.b16 %v349, %v341
  %v430 = vpack.c.b16 %v350, %v342
  %v431 = vpack.c.b16 %v351, %v343
  %v432 = vpack.c.b16 %v352, %v344
  %v433 = vpack.c.b16 %v353, %v345
  %v434 = vpack.c.b16 %v354, %v346
  %v435 = vpack.c.b16 %v355, %v347
  %v436 = vpack.c.b16 %v356, %v348
  %v437 = vpack.c.b16 %v365, %v357
  %v438 = vpack.c.b16 %v366, %v358
  %v439 = vpack.c.b16 %v367, %v359
  %v440 = vpack.c.b16 %v368, %v360
  %v441 = vpack.c.b16 %v369, %v361
  %v442 = vpack.c.b16 %v370, %v362
  %v443 = vpack.c.b16 %v371, %v363
  %v444 = vpack.c.b16 %v372, %v364
  %v445 = vpack.c.b16 %v381, %v373
  %v446 = vpack.c.b16 %v382, %v374
  %v447 = vpack.c.b16 %v383, %v375
  %v448 = vpack.c.b16 %v384, %v376
  %v449 = vpack.c.b16 %v385, %v377
  %v450 = vpack.c.b16 %v386, %v378
  %v451 = vpack.c.b16 %v387, %v379
  %v452 = vpack.c.b16 %v388, %v380
  %v630 = vunpack.c.l.b16 %v76
  %v631 = vunpack.c.h.b16 %v76
  %v632 = vunpack.c.l.b16 %v77
  %v633 = vunpack.c.h.b16 %v77
  %v634 = vunpack.c.l.b16 %v78
  %v635 = vunpack.c.h.b16 %v78
  %v636 = vunpack.c.l.b16 %v79
  %v637 = vunpack.c.h.b16 %v79
  %v638 = vunpack.c.l.b16 %v80
  %v639 = vunpack.c.h.b16 %v80
  %v640 = vunpack.c.l.b16 %v81
  %v641 = vunpack.c.h.b16 %v81
  %v642 = vunpack.c.l.b16 %v82
  %v643 = vunpack.c.h.b16 %v82
  %v644 = vunpack.c.l.b16 %v83
  %v645 = vunpack.c.h.b16 %v83
  %v646 = vunpack.c.l.b16 %v84
  %v647 = vunpack.c.h.b16 %v84
  %v648 = vunpack.c.l.b16 %v85
  %v649 = vunpack.c.h.b16 %v85
  %v650 = vunpack.c.l.b16 %v86
  %v651 = vunpack.c.h.b16 %v86
  %v652 = vunpack.c.l.b16 %v87
  %v653 = vunpack.c.h.b16 %v87
  %v654 = vunpack.c.l.b16 %v88
  %v655 = vunpack.c.h.b16 %v88
  %v656 = vunpack.c.l.b16 %v89
  %v657 = vunpack.c.h.b16 %v89
  %v658 = vunpack.c.l.b16 %v90
  %v659 = vunpack.c.h.b16 %v90
  %v660 = vunpack.c.l.b16 %v91
  %v661 = vunpack.c.h.b16 %v91
  %v662 = vunpack.c.l.b16 %v92
  %v663 = vunpack.c.h.b16 %v92
  %v664 = vunpack.c.l.b16 %v93
  %v665 = vunpack.c.h.b16 %v93
  %v666 = vunpack.c.l.b16 %v94
  %v667 = vunpack.c.h.b16 %v94
  %v668 = vunpack.c.l.b16 %v95
  %v669 = vunpack.c.h.b16 %v95
  %v670 = vunpack.c.l.b16 %v96
  %v671 = vunpack.c.h.b16 %v96
  %v672 = vunpack.c.l.b16 %v97
  %v673 = vunpack.c.h.b16 %v97
  %v674 = vunpack.c.l.b16 %v98
  %v675 = vunpack.c.h.b16 %v98
  %v676 = vunpack.c.l.b16 %v99
  %v677 = vunpack.c.h.b16 %v99
  %v678 = vunpack.c.l.b16 %v100
  %v679 = vunpack.c.h.b16 %v100
  %v680 = vunpack.c.l.b16 %v101
  %v681 = vunpack.c.h.b16 %v101
  %v682 = vunpack.c.l.b16 %v102
  %v683 = vunpack.c.h.b16 %v102
  %v684 = vunpack.c.l.b16 %v103
  %v685 = vunpack.c.h.b16 %v103
  %v686 = vunpack.c.l.b16 %v104
  %v687 = vunpack.c.h.b16 %v104
  %v688 = vunpack.c.l.b16 %v105
  %v689 = vunpack.c.h.b16 %v105
  %v690 = vunpack.c.l.b16 %v106
  %v691 = vunpack.c.h.b16 %v106
  %v692 = vunpack.c.l.b16 %v107
  %v693 = vunpack.c.h.b16 %v107
  %v694 = vunpack.c.l.b16 %v108
  %v695 = vunpack.c.h.b16 %v108
  %v696 = vunpack.c.l.b16 %v109
  %v697 = vunpack.c.h.b16 %v109
  %v698 = vunpack.c.l.b16 %v110
  %v699 = vunpack.c.h.b16 %v110
  %v700 = vunpack.c.l.b16 %v111
  %v701 = vunpack.c.h.b16 %v111
  %v702 = vunpack.c.l.b16 %v112
  %v703 = vunpack.c.h.b16 %v112
  %v704 = vunpack.c.l.b16 %v113
  %v705 = vunpack.c.h.b16 %v113
  %v706 = vunpack.c.l.b16 %v114
  %v707 = vunpack.c.h.b16 %v114
  %v708 = vunpack.c.l.b16 %v115
  %v709 = vunpack.c.h.b16 %v115
  %v710 = vunpack.c.l.b16 %v116
  %v711 = vunpack.c.h.b16 %v116
  %v712 = vunpack.c.l.b16 %v117
  %v713 = vunpack.c.h.b16 %v117
  %v714 = vunpack.c.l.b16 %v118
  %v715 = vunpack.c.h.b16 %v118
  %v716 = vunpack.c.l.b16 %v119
  %v717 = vunpack.c.h.b16 %v119
  %v718 = vunpack.c.l.b16 %v120
  %v719 = vunpack.c.h.b16 %v120
  %v720 = vunpack.c.l.b16 %v121
  %v721 = vunpack.c.h.b16 %v121
  %v722 = vunpack.c.l.b16 %v122
  %v723 = vunpack.c.h.b16 %v122
  %v724 = vunpack.c.l.b16 %v123
  %v725 = vunpack.c.h.b16 %v123
  %v726 = vunpack.c.l.b16 %v124
  %v727 = vunpack.c.h.b16 %v124
  %v728 = vunpack.c.l.b16 %v125
  %v729 = vunpack.c.h.b16 %v125
  %v730 = vunpack.c.l.b16 %v126
  %v731 = vunpack.c.h.b16 %v126
  %v732 = vunpack.c.l.b16 %v127
  %v733 = vunpack.c.h.b16 %v127
  %v734 = vunpack.c.l.b16 %v128
  %v735 = vunpack.c.h.b16 %v128
  %v736 = vunpack.c.l.b16 %v129
  %v737 = vunpack.c.h.b16 %v129
  %v738 = vunpack.c.l.b16 %v130
  %v739 = vunpack.c.h.b16 %v130
  %v740 = vunpack.c.l.b16 %v131
  %v741 = vunpack.c.h.b16 %v131
  %v742 = vunpack.c.l.b16 %v132
  %v743 = vunpack.c.h.b16 %v132
  %v744 = vunpack.c.l.b16 %v133
  %v745 = vunpack.c.h.b16 %v133
  %v746 = vunpack.c.l.b16 %v134
  %v747 = vunpack.c.h.b16 %v134
  %v748 = vunpack.c.l.b16 %v135
  %v749 = vunpack.c.h.b16 %v135
  %v750 = vunpack.c.l.b16 %v136
  %v751 = vunpack.c.h.b16 %v136
  %v752 = vunpack.c.l.b16 %v137
  %v753 = vunpack.c.h.b16 %v137
  %v754 = vunpack.c.l.b16 %v138
  %v755 = vunpack.c.h.b16 %v138
  %v756 = vunpack.c.l.b16 %v139
  %v757 = vunpack.c.h.b16 %v139
  %v758 = vunpack.c.l.b16 %v140
  %v759 = vunpack.c.h.b16 %v140
  %v760 = vunpack.c.l.b16 %v141
  %v761 = vunpack.c.h.b16 %v141
  %v762 = vunpack.c.l.b16 %v142
  %v763 = vunpack.c.h.b16 %v142
  %v764 = vunpack.c.l.b16 %v143
  %v765 = vunpack.c.h.b16 %v143
  %v766 = vunpack.c.l.b16 %v144
  %v767 = vunpack.c.h.b16 %v144
  %v768 = vunpack.c.l.b16 %v145
  %v769 = vunpack.c.h.b16 %v145
  %v770 = vunpack.c.l.b16 %v146
  %v771 = vunpack.c.h.b16 %v146
  %v772 = vunpack.c.l.b16 %v147
  %v773 = vunpack.c.h.b16 %v147
  %v774 = vunpack.c.l.b16 %v148
  %v775 = vunpack.c.h.b16 %v148
  %v776 = vunpack.c.l.b16 %v149
  %v777 = vunpack.c.h.b16 %v149
  %v778 = vunpack.c.l.b16 %v150
  %v779 = vunpack.c.h.b16 %v150
  %v780 = vunpack.c.l.b16 %v151
  %v781 = vunpack.c.h.b16 %v151
  %v782 = vunpack.c.l.b16 %v152
  %v783 = vunpack.c.h.b16 %v152
  %v784 = vunpack.c.l.b16 %v153
  %v785 = vunpack.c.h.b16 %v153
  %v786 = vunpack.c.l.b16 %v154
  %v787 = vunpack.c.h.b16 %v154
  %v788 = vunpack.c.l.b16 %v155
  %v789 = vunpack.c.h.b16 %v155
  %v790 = vunpack.c.l.b16 %v156
  %v791 = vunpack.c.h.b16 %v156
  %v792 = vunpack.c.l.b16 %v157
  %v793 = vunpack.c.h.b16 %v157
  %v794 = vunpack.c.l.b16 %v158
  %v795 = vunpack.c.h.b16 %v158
  %v796 = vunpack.c.l.b16 %v159
  %v797 = vunpack.c.h.b16 %v159
  %v798 = vunpack.c.l.b16 %v160
  %v799 = vunpack.c.h.b16 %v160
  %v800 = vunpack.c.l.b16 %v161
  %v801 = vunpack.c.h.b16 %v161
  %v802 = vunpack.c.l.b16 %v162
  %v803 = vunpack.c.h.b16 %v162
  %v804 = vunpack.c.l.b16 %v163
  %v805 = vunpack.c.h.b16 %v163
  %v806 = vunpack.c.l.b16 %v164
  %v807 = vunpack.c.h.b16 %v164
  %v808 = vunpack.c.l.b16 %v165
  %v809 = vunpack.c.h.b16 %v165
  %v810 = vunpack.c.l.b16 %v166
  %v811 = vunpack.c.h.b16 %v166
  %v812 = vunpack.c.l.b16 %v167
  %v813 = vunpack.c.h.b16 %v167
  %v814 = vunpack.c.l.b16 %v168
  %v815 = vunpack.c.h.b16 %v168
  %v816 = vunpack.c.l.b16 %v169
  %v817 = vunpack.c.h.b16 %v169
  %v818 = vunpack.c.l.b16 %v170
  %v819 = vunpack.c.h.b16 %v170
  %v820 = vunpack.c.l.b16 %v171
  %v821 = vunpack.c.h.b16 %v171
  %v822 = vunpack.c.l.b16 %v172
  %v823 = vunpack.c.h.b16 %v172
  %v824 = vunpack.c.l.b16 %v173
  %v825 = vunpack.c.h.b16 %v173
  %v826 = vunpack.c.l.b16 %v174
  %v827 = vunpack.c.h.b16 %v174
  %v828 = vunpack.c.l.b16 %v175
  %v829 = vunpack.c.h.b16 %v175
  %v830 = vunpack.c.l.b16 %v176
  %v831 = vunpack.c.h.b16 %v176
  %v832 = vunpack.c.l.b16 %v177
  %v833 = vunpack.c.h.b16 %v177
  %v834 = vunpack.c.l.b16 %v178
  %v835 = vunpack.c.h.b16 %v178
  %v836 = vunpack.c.l.b16 %v179
  %v837 = vunpack.c.h.b16 %v179
  %v838 = vunpack.c.l.b16 %v180
  %v839 = vunpack.c.h.b16 %v180
  %v840 = vunpack.c.l.b16 %v181
  %v841 = vunpack.c.h.b16 %v181
  %v842 = vunpack.c.l.b16 %v182
  %v843 = vunpack.c.h.b16 %v182
  %v844 = vunpack.c.l.b16 %v183
  %v845 = vunpack.c.h.b16 %v183
  %v846 = vunpack.c.l.b16 %v184
  %v847 = vunpack.c.h.b16 %v184
  %v848 = vunpack.c.l.b16 %v185
  %v849 = vunpack.c.h.b16 %v185
  %v850 = vunpack.c.l.b16 %v186
  %v851 = vunpack.c.h.b16 %v186
  %v852 = vunpack.c.l.b16 %v187
  %v853 = vunpack.c.h.b16 %v187
  %v854 = vunpack.c.l.b16 %v188
  %v855 = vunpack.c.h.b16 %v188
  %v856 = vunpack.c.l.b16 %v189
  %v857 = vunpack.c.h.b16 %v189
  %v858 = vunpack.c.l.b16 %v190
  %v859 = vunpack.c.h.b16 %v190
  %v860 = vunpack.c.l.b16 %v191
  %v861 = vunpack.c.h.b16 %v191
  %v862 = vunpack.c.l.b16 %v192
  %v863 = vunpack.c.h.b16 %v192
  %v864 = vunpack.c.l.b16 %v193
  %v865 = vunpack.c.h.b16 %v193
  %v866 = vunpack.c.l.b16 %v194
  %v867 = vunpack.c.h.b16 %v194
  %v868 = vunpack.c.l.b16 %v195
  %v869 = vunpack.c.h.b16 %v195
  %v870 = vunpack.c.l.b16 %v196
  %v871 = vunpack.c.h.b16 %v196
  %v872 = vpack.c.b16 %v632, %v630
  %v873 = vpack.c.b16 %v633, %v631
  %v874 = vpack.c.b16 %v636, %v634
  %v875 = vpack.c.b16 %v637, %v635
  %v876 = vpack.c.b16 %v640, %v638
  %v877 = vpack.c.b16 %v641, %v639
  %v878 = vpack.c.b16 %v644, %v642
  %v879 = vpack.c.b16 %v645, %v643
  %v880 = vpack.c.b16 %v648, %v646
  %v881 = vpack.c.b16 %v649, %v647
  %v882 = vpack.c.b16 %v652, %v650
  %v883 = vpack.c.b16 %v653, %v651
  %v884 = vpack.c.b16 %v656, %v654
  %v885 = vpack.c.b16 %v657, %v655
  %v886 = vpack.c.b16 %v660, %v658
  %v887 = vpack.c.b16 %v661, %v659
  %v888 = vpack.c.b16 %v664, %v662
  %v889 = vpack.c.b16 %v665, %v663
  %v890 = vpack.c.b16 %v668, %v666
  %v891 = vpack.c.b16 %v669, %v667
  %v892 = vpack.c.b16 %v672, %v670
  %v893 = vpack.c.b16 %v673, %v671
  %v894 = vpack.c.b16 %v676, %v674
  %v895 = vpack.c.b16 %v677, %v675
  %v896 = vpack.c.b16 %v680, %v678
  %v897 = vpack.c.b16 %v681, %v679
  %v898 = vpack.c.b16 %v684, %v682
  %v899 = vpack.c.b16 %v685, %v683
  %v900 = vpack.c.b16 %v688, %v686
  %v901 = vpack.c.b16 %v689, %v687
  %v902 = vpack.c.b16 %v692, %v690
  %v903 = vpack.c.b16 %v693, %v691
  %v904 = vpack.c.b16 %v696, %v694
  %v905 = vpack.c.b16 %v697, %v695
  %v906 = vpack.c.b16 %v700, %v698
  %v907 = vpack.c.b16 %v701, %v699
  %v908 = vpack.c.b16 %v704, %v702
  %v909 = vpack.c.b16 %v705, %v703
  %v910 = vpack.c.b16 %v708, %v706
  %v911 = vpack.c.b16 %v709, %v707
  %v912 = vpack.c.b16 %v712, %v710
  %v913 = vpack.c.b16 %v713, %v711
  %v914 = vpack.c.b16 %v716, %v714
  %v915 = vpack.c.b16 %v717, %v715
  %v916 = vpack.c.b16 %v720, %v718
  %v917 = vpack.c.b16 %v721, %v719
  %v918 = vpack.c.b16 %v724, %v722
  %v919 = vpack.c.b16 %v725, %v723
  %v920 = vpack.c.b16 %v728, %v726
  %v921 = vpack.c.b16 %v729, %v727
  %v922 = vpack.c.b16 %v732, %v730
  %v923 = vpack.c.b16 %v733, %v731
  %v924 = vpack.c.b16 %v736, %v734
  %v925 = vpack.c.b16 %v737, %v735
  %v926 = vpack.c.b16 %v740, %v738
  %v927 = vpack.c.b16 %v741, %v739
  %v928 = vpack.c.b16 %v744, %v742
  %v929 = vpack.c.b16 %v745, %v743
  %v930 = vpack.c.b16 %v748, %v746
  %v931 = vpack.c.b16 %v749, %v747
  %v932 = vpack.c.b16 %v752, %v750
  %v933 = vpack.c.b16 %v753, %v751
  %v934 = vpack.c.b16 %v756, %v754
  %v935 = vpack.c.b16 %v757, %v755
  %v936 = vpack.c.b16 %v760, %v758
  %v937 = vpack.c.b16 %v761, %v759
  %v938 = vpack.c.b16 %v764, %v762
  %v939 = vpack.c.b16 %v765, %v763
  %v940 = vpack.c.b16 %v768, %v766
  %v941 = vpack.c.b16 %v769, %v767
  %v942 = vpack.c.b16 %v772, %v770
  %v943 = vpack.c.b16 %v773, %v771
  %v944 = vpack.c.b16 %v776, %v774
  %v945 = vpack.c.b16 %v777, %v775
  %v946 = vpack.c.b16 %v780, %v778
  %v947 = vpack.c.b16 %v781, %v779
  %v948 = vpack.c.b16 %v784, %v782
  %v949 = vpack.c.b16 %v785, %v783
  %v950 = vpack.c.b16 %v788, %v786
  %v951 = vpack.c.b16 %v789, %v787
  %v952 = vpack.c.b16 %v792, %v790
  %v953 = vpack.c.b16 %v793, %v791
  %v954 = vpack.c.b16 %v796, %v794
  %v955 = vpack.c.b16 %v797, %v795
  %v956 = vpack.c.b16 %v800, %v798
  %v957 = vpack.c.b16 %v801, %v799
  %v958 = vpack.c.b16 %v804, %v802
  %v959 = vpack.c.b16 %v805, %v803
  %v960 = vpack.c.b16 %v808, %v806
  %v961 = vpack.c.b16 %v809, %v807
  %v962 = vpack.c.b16 %v812, %v810
  %v963 = vpack.c.b16 %v813, %v811
  %v964 = vpack.c.b16 %v816, %v814
  %v965 = vpack.c.b16 %v817, %v815
  %v966 = vpack.c.b16 %v820, %v818
  %v967 = vpack.c.b16 %v821, %v819
  %v968 = vpack.c.b16 %v824, %v822
  %v969 = vpack.c.b16 %v825, %v823
  %v970 = vpack.c.b16 %v828, %v826
  %v971 = vpack.c.b16 %v829, %v827
  %v972 = vpack.c.b16 %v832, %v830
  %v973 = vpack.c.b16 %v833, %v831
  %v974 = vpack.c.b16 %v836, %v834
  %v975 = vpack.c.b16 %v837, %v835
  %v976 = vpack.c.b16 %v840, %v838
  %v977 = vpack.c.b16 %v841, %v839
  %v978 = vpack.c.b16 %v844, %v842
  %v979 = vpack.c.b16 %v845, %v843
  %v980 = vpack.c.b16 %v848, %v846
  %v981 = vpack.c.b16 %v849, %v847
  %v982 = vpack.c.b16 %v852, %v850
  %v983 = vpack.c.b16 %v853, %v851
  %v984 = vpack.c.b16 %v856, %v854
  %v985 = vpack.c.b16 %v857, %v855
  %v986 = vpack.c.b16 %v860, %v858
  %v987 = vpack.c.b16 %v861, %v859
  %v988 = vpack.c.b16 %v864, %v862
  %v989 = vpack.c.b16 %v865, %v863
  %v990 = vpack.c.b16 %v868, %v866
  %v991 = vpack.c.b16 %v869, %v867
  %v992 = vpack.c.b16 %v870, %v870
  %v993 = vpack.c.b16 %v871, %v871
  %vm1114 = vcmask 556032
  %v1116 = vsel %vm1114, %v396, 0
  %v1119 = vsel %vm1114, %v404, 0
  %v1122 = vsel %vm1114, %v412, 0
  %v1125 = vsel %vm1114, %v420, 0
  %v1128 = vsel %vm1114, %v428, 0
  %v1131 = vsel %vm1114, %v436, 0
  %v1134 = vsel %vm1114, %v444, 0
  %v1137 = vsel %vm1114, %v452, 0
  %vm1139 = vcmask 1041408
  %v1141 = vsel %vm1139, %v992, 0
  %v1144 = vsel %vm1139, %v993, 0
  %1146 = vmatprep.subr.bf16.mxu0 %v873
  %1147 = vmatpush1.bf16.msra.mxu0 %v872
  %1148 = vmatprep.subr.bf16.mxu0 %v875
  %1149 = vmatpush1.bf16.msra.mxu0 %v874
  %1150 = vmatprep.subr.bf16.mxu0 %v877
  %1151 = vmatpush1.bf16.msra.mxu0 %v876
  %1152 = vmatprep.subr.bf16.mxu0 %v879
  %1153 = vmatpush1.bf16.msra.mxu0 %v878
  %1154 = vmatprep.subr.bf16.mxu0 %v881
  %1155 = vmatpush1.bf16.msra.mxu0 %v880
  %1156 = vmatprep.subr.bf16.mxu0 %v883
  %1157 = vmatpush1.bf16.msra.mxu0 %v882
  %1158 = vmatprep.subr.bf16.mxu0 %v885
  %1159 = vmatpush1.bf16.msra.mxu0 %v884
  %1160 = vmatprep.subr.bf16.mxu0 %v887
  %1161 = vmatpush1.bf16.msra.mxu0 %v886
  %1162 = vmatprep.subr.bf16.mxu0 %v889
  %1163 = vmatpush1.bf16.msra.mxu0 %v888
  %1164 = vmatprep.subr.bf16.mxu0 %v891
  %1165 = vmatpush1.bf16.msra.mxu0 %v890
  %1166 = vmatprep.subr.bf16.mxu0 %v893
  %1167 = vmatpush1.bf16.msra.mxu0 %v892
  %1168 = vmatprep.subr.bf16.mxu0 %v895
  %1169 = vmatpush1.bf16.msra.mxu0 %v894
  %1170 = vmatprep.subr.bf16.mxu0 %v897
  %1171 = vmatpush1.bf16.msra.mxu0 %v896
  %1172 = vmatprep.subr.bf16.mxu0 %v899
  %1173 = vmatpush1.bf16.msra.mxu0 %v898
  %1174 = vmatprep.subr.bf16.mxu0 %v901
  %1175 = vmatpush1.bf16.msra.mxu0 %v900
  %1176 = vmatprep.subr.bf16.mxu0 %v903
  %1177 = vmatpush1.bf16.msra.mxu0 %v902
  %1178 = vmatprep.mubr.bf16.mxu0 %v390
  %1179 = vmatmul.mubr.bf16.gmra.mrb[0].mxu0 %v389
  %v1180 = vpop.f32.mrb[0].mxu0
  %v1181 = vadd.f32 0.0, %v1180
  %v1182 = vpop.f32.mrb[0].mxu0
  %v1183 = vadd.f32 0.0, %v1182
  %v1184 = vpop.f32.mrb[0].mxu0
  %v1185 = vadd.f32 0.0, %v1184
  %v1186 = vpop.f32.mrb[0].mxu0
  %v1187 = vadd.f32 0.0, %v1186
  %1188 = vmatprep.mubr.bf16.mxu0 %v398
  %1189 = vmatmul.mubr.bf16.gmra.mrb[0].mxu0 %v397
  %v1190 = vpop.f32.mrb[0].mxu0
  %v1191 = vadd.f32 0.0, %v1190
  %v1192 = vpop.f32.mrb[0].mxu0
  %v1193 = vadd.f32 0.0, %v1192
  %v1194 = vpop.f32.mrb[0].mxu0
  %v1195 = vadd.f32 0.0, %v1194
  %v1196 = vpop.f32.mrb[0].mxu0
  %v1197 = vadd.f32 0.0, %v1196
  %1198 = vmatprep.mubr.bf16.mxu0 %v406
  %1199 = vmatmul.mubr.bf16.gmra.mrb[0].mxu0 %v405
  %v1200 = vpop.f32.mrb[0].mxu0
  %v1201 = vadd.f32 0.0, %v1200
  %v1202 = vpop.f32.mrb[0].mxu0
  %v1203 = vadd.f32 0.0, %v1202
  %v1204 = vpop.f32.mrb[0].mxu0
  %v1205 = vadd.f32 0.0, %v1204
  %v1206 = vpop.f32.mrb[0].mxu0
  %v1207 = vadd.f32 0.0, %v1206
  %1208 = vmatprep.mubr.bf16.mxu0 %v414
  %1209 = vmatmul.mubr.bf16.gmra.mrb[0].mxu0 %v413
  %v1210 = vpop.f32.mrb[0].mxu0
  %v1211 = vadd.f32 0.0, %v1210
  %v1212 = vpop.f32.mrb[0].mxu0
  %v1213 = vadd.f32 0.0, %v1212
  %v1214 = vpop.f32.mrb[0].mxu0
  %v1215 = vadd.f32 0.0, %v1214
  %v1216 = vpop.f32.mrb[0].mxu0
  %v1217 = vadd.f32 0.0, %v1216
  %1218 = vmatprep.mubr.bf16.mxu0 %v422
  %1219 = vmatmul.mubr.bf16.gmra.mrb[0].mxu0 %v421
  %v1220 = vpop.f32.mrb[0].mxu0
  %v1221 = vadd.f32 0.0, %v1220
  %v1222 = vpop.f32.mrb[0].mxu0
  %v1223 = vadd.f32 0.0, %v1222
  %v1224 = vpop.f32.mrb[0].mxu0
  %v1225 = vadd.f32 0.0, %v1224
  %v1226 = vpop.f32.mrb[0].mxu0
  %v1227 = vadd.f32 0.0, %v1226
  %1228 = vmatprep.mubr.bf16.mxu0 %v430
  %1229 = vmatmul.mubr.bf16.gmra.mrb[0].mxu0 %v429
  %v1230 = vpop.f32.mrb[0].mxu0
  %v1231 = vadd.f32 0.0, %v1230
  %v1232 = vpop.f32.mrb[0].mxu0
  %v1233 = vadd.f32 0.0, %v1232
  %v1234 = vpop.f32.mrb[0].mxu0
  %v1235 = vadd.f32 0.0, %v1234
  %v1236 = vpop.f32.mrb[0].mxu0
  %v1237 = vadd.f32 0.0, %v1236
  %1238 = vmatprep.mubr.bf16.mxu0 %v438
  %1239 = vmatmul.mubr.bf16.gmra.mrb[0].mxu0 %v437
  %v1240 = vpop.f32.mrb[0].mxu0
  %v1241 = vadd.f32 0.0, %v1240
  %v1242 = vpop.f32.mrb[0].mxu0
  %v1243 = vadd.f32 0.0, %v1242
  %v1244 = vpop.f32.mrb[0].mxu0
  %v1245 = vadd.f32 0.0, %v1244
  %v1246 = vpop.f32.mrb[0].mxu0
  %v1247 = vadd.f32 0.0, %v1246
  %1248 = vmatprep.mubr.bf16.mxu0 %v446
  %1249 = vmatmul.mubr.bf16.gmra.mrb[0].mxu0 %v445
  %v1250 = vpop.f32.mrb[0].mxu0
  %v1251 = vadd.f32 0.0, %v1250
  %v1252 = vpop.f32.mrb[0].mxu0
  %v1253 = vadd.f32 0.0, %v1252
  %v1254 = vpop.f32.mrb[0].mxu0
  %v1255 = vadd.f32 0.0, %v1254
  %v1256 = vpop.f32.mrb[0].mxu0
  %v1257 = vadd.f32 0.0, %v1256
  %1258 = vdwg.mxu0
  %1259 = vmatprep.subr.bf16.mxu0 %v905
  %1260 = vmatpush1.bf16.msra.mxu0 %v904
  %1261 = vmatprep.subr.bf16.mxu0 %v907
  %1262 = vmatpush1.bf16.msra.mxu0 %v906
  %1263 = vmatprep.subr.bf16.mxu0 %v909
  %1264 = vmatpush1.bf16.msra.mxu0 %v908
  %1265 = vmatprep.subr.bf16.mxu0 %v911
  %1266 = vmatpush1.bf16.msra.mxu0 %v910
  %1267 = vmatprep.subr.bf16.mxu0 %v913
  %1268 = vmatpush1.bf16.msra.mxu0 %v912
  %1269 = vmatprep.subr.bf16.mxu0 %v915
  %1270 = vmatpush1.bf16.msra.mxu0 %v914
  %1271 = vmatprep.subr.bf16.mxu0 %v917
  %1272 = vmatpush1.bf16.msra.mxu0 %v916
  %1273 = vmatprep.subr.bf16.mxu0 %v919
  %1274 = vmatpush1.bf16.msra.mxu0 %v918
  %1275 = vmatprep.subr.bf16.mxu0 %v921
  %1276 = vmatpush1.bf16.msra.mxu0 %v920
  %1277 = vmatprep.subr.bf16.mxu0 %v923
  %1278 = vmatpush1.bf16.msra.mxu0 %v922
  %1279 = vmatprep.subr.bf16.mxu0 %v925
  %1280 = vmatpush1.bf16.msra.mxu0 %v924
  %1281 = vmatprep.subr.bf16.mxu0 %v927
  %1282 = vmatpush1.bf16.msra.mxu0 %v926
  %1283 = vmatprep.subr.bf16.mxu0 %v929
  %1284 = vmatpush1.bf16.msra.mxu0 %v928
  %1285 = vmatprep.subr.bf16.mxu0 %v931
  %1286 = vmatpush1.bf16.msra.mxu0 %v930
  %1287 = vmatprep.subr.bf16.mxu0 %v933
  %1288 = vmatpush1.bf16.msra.mxu0 %v932
  %1289 = vmatprep.subr.bf16.mxu0 %v935
  %1290 = vmatpush1.bf16.msra.mxu0 %v934
  %1291 = vmatprep.mubr.bf16.mxu0 %v392
  %1292 = vmatmul.mubr.bf16.gmra.mrb[0].mxu0 %v391
  %v1293 = vpop.f32.mrb[0].mxu0
  %v1294 = vadd.f32 %v1181, %v1293
  %v1295 = vpop.f32.mrb[0].mxu0
  %v1296 = vadd.f32 %v1183, %v1295
  %v1297 = vpop.f32.mrb[0].mxu0
  %v1298 = vadd.f32 %v1185, %v1297
  %v1299 = vpop.f32.mrb[0].mxu0
  %v1300 = vadd.f32 %v1187, %v1299
  %1301 = vmatprep.mubr.bf16.mxu0 %v400
  %1302 = vmatmul.mubr.bf16.gmra.mrb[0].mxu0 %v399
  %v1303 = vpop.f32.mrb[0].mxu0
  %v1304 = vadd.f32 %v1191, %v1303
  %v1305 = vpop.f32.mrb[0].mxu0
  %v1306 = vadd.f32 %v1193, %v1305
  %v1307 = vpop.f32.mrb[0].mxu0
  %v1308 = vadd.f32 %v1195, %v1307
  %v1309 = vpop.f32.mrb[0].mxu0
  %v1310 = vadd.f32 %v1197, %v1309
  %1311 = vmatprep.mubr.bf16.mxu0 %v408
  %1312 = vmatmul.mubr.bf16.gmra.mrb[0].mxu0 %v407
  %v1313 = vpop.f32.mrb[0].mxu0
  %v1314 = vadd.f32 %v1201, %v1313
  %v1315 = vpop.f32.mrb[0].mxu0
  %v1316 = vadd.f32 %v1203, %v1315
  %v1317 = vpop.f32.mrb[0].mxu0
  %v1318 = vadd.f32 %v1205, %v1317
  %v1319 = vpop.f32.mrb[0].mxu0
  %v1320 = vadd.f32 %v1207, %v1319
  %1321 = vmatprep.mubr.bf16.mxu0 %v416
  %1322 = vmatmul.mubr.bf16.gmra.mrb[0].mxu0 %v415
  %v1323 = vpop.f32.mrb[0].mxu0
  %v1324 = vadd.f32 %v1211, %v1323
  %v1325 = vpop.f32.mrb[0].mxu0
  %v1326 = vadd.f32 %v1213, %v1325
  %v1327 = vpop.f32.mrb[0].mxu0
  %v1328 = vadd.f32 %v1215, %v1327
  %v1329 = vpop.f32.mrb[0].mxu0
  %v1330 = vadd.f32 %v1217, %v1329
  %1331 = vmatprep.mubr.bf16.mxu0 %v424
  %1332 = vmatmul.mubr.bf16.gmra.mrb[0].mxu0 %v423
  %v1333 = vpop.f32.mrb[0].mxu0
  %v1334 = vadd.f32 %v1221, %v1333
  %v1335 = vpop.f32.mrb[0].mxu0
  %v1336 = vadd.f32 %v1223, %v1335
  %v1337 = vpop.f32.mrb[0].mxu0
  %v1338 = vadd.f32 %v1225, %v1337
  %v1339 = vpop.f32.mrb[0].mxu0
  %v1340 = vadd.f32 %v1227, %v1339
  %1341 = vmatprep.mubr.bf16.mxu0 %v432
  %1342 = vmatmul.mubr.bf16.gmra.mrb[0].mxu0 %v431
  %v1343 = vpop.f32.mrb[0].mxu0
  %v1344 = vadd.f32 %v1231, %v1343
  %v1345 = vpop.f32.mrb[0].mxu0
  %v1346 = vadd.f32 %v1233, %v1345
  %v1347 = vpop.f32.mrb[0].mxu0
  %v1348 = vadd.f32 %v1235, %v1347
  %v1349 = vpop.f32.mrb[0].mxu0
  %v1350 = vadd.f32 %v1237, %v1349
  %1351 = vmatprep.mubr.bf16.mxu0 %v440
  %1352 = vmatmul.mubr.bf16.gmra.mrb[0].mxu0 %v439
  %v1353 = vpop.f32.mrb[0].mxu0
  %v1354 = vadd.f32 %v1241, %v1353
  %v1355 = vpop.f32.mrb[0].mxu0
  %v1356 = vadd.f32 %v1243, %v1355
  %v1357 = vpop.f32.mrb[0].mxu0
  %v1358 = vadd.f32 %v1245, %v1357
  %v1359 = vpop.f32.mrb[0].mxu0
  %v1360 = vadd.f32 %v1247, %v1359
  %1361 = vmatprep.mubr.bf16.mxu0 %v448
  %1362 = vmatmul.mubr.bf16.gmra.mrb[0].mxu0 %v447
  %v1363 = vpop.f32.mrb[0].mxu0
  %v1364 = vadd.f32 %v1251, %v1363
  %v1365 = vpop.f32.mrb[0].mxu0
  %v1366 = vadd.f32 %v1253, %v1365
  %v1367 = vpop.f32.mrb[0].mxu0
  %v1368 = vadd.f32 %v1255, %v1367
  %v1369 = vpop.f32.mrb[0].mxu0
  %v1370 = vadd.f32 %v1257, %v1369
  %1371 = vdwg.mxu0
  %1372 = vmatprep.subr.bf16.mxu0 %v937
  %1373 = vmatpush1.bf16.msra.mxu0 %v936
  %1374 = vmatprep.subr.bf16.mxu0 %v939
  %1375 = vmatpush1.bf16.msra.mxu0 %v938
  %1376 = vmatprep.subr.bf16.mxu0 %v941
  %1377 = vmatpush1.bf16.msra.mxu0 %v940
  %1378 = vmatprep.subr.bf16.mxu0 %v943
  %1379 = vmatpush1.bf16.msra.mxu0 %v942
  %1380 = vmatprep.subr.bf16.mxu0 %v945
  %1381 = vmatpush1.bf16.msra.mxu0 %v944
  %1382 = vmatprep.subr.bf16.mxu0 %v947
  %1383 = vmatpush1.bf16.msra.mxu0 %v946
  %1384 = vmatprep.subr.bf16.mxu0 %v949
  %1385 = vmatpush1.bf16.msra.mxu0 %v948
  %1386 = vmatprep.subr.bf16.mxu0 %v951
  %1387 = vmatpush1.bf16.msra.mxu0 %v950
  %1388 = vmatprep.subr.bf16.mxu0 %v953
  %1389 = vmatpush1.bf16.msra.mxu0 %v952
  %1390 = vmatprep.subr.bf16.mxu0 %v955
  %1391 = vmatpush1.bf16.msra.mxu0 %v954
  %1392 = vmatprep.subr.bf16.mxu0 %v957
  %1393 = vmatpush1.bf16.msra.mxu0 %v956
  %1394 = vmatprep.subr.bf16.mxu0 %v959
  %1395 = vmatpush1.bf16.msra.mxu0 %v958
  %1396 = vmatprep.subr.bf16.mxu0 %v961
  %1397 = vmatpush1.bf16.msra.mxu0 %v960
  %1398 = vmatprep.subr.bf16.mxu0 %v963
  %1399 = vmatpush1.bf16.msra.mxu0 %v962
  %1400 = vmatprep.subr.bf16.mxu0 %v965
  %1401 = vmatpush1.bf16.msra.mxu0 %v964
  %1402 = vmatprep.subr.bf16.mxu0 %v967
  %1403 = vmatpush1.bf16.msra.mxu0 %v966
  %1404 = vmatprep.mubr.bf16.mxu0 %v394
  %1405 = vmatmul.mubr.bf16.gmra.mrb[0].mxu0 %v393
  %v1406 = vpop.f32.mrb[0].mxu0
  %v1407 = vadd.f32 %v1294, %v1406
  %v1408 = vpop.f32.mrb[0].mxu0
  %v1409 = vadd.f32 %v1296, %v1408
  %v1410 = vpop.f32.mrb[0].mxu0
  %v1411 = vadd.f32 %v1298, %v1410
  %v1412 = vpop.f32.mrb[0].mxu0
  %v1413 = vadd.f32 %v1300, %v1412
  %1414 = vmatprep.mubr.bf16.mxu0 %v402
  %1415 = vmatmul.mubr.bf16.gmra.mrb[0].mxu0 %v401
  %v1416 = vpop.f32.mrb[0].mxu0
  %v1417 = vadd.f32 %v1304, %v1416
  %v1418 = vpop.f32.mrb[0].mxu0
  %v1419 = vadd.f32 %v1306, %v1418
  %v1420 = vpop.f32.mrb[0].mxu0
  %v1421 = vadd.f32 %v1308, %v1420
  %v1422 = vpop.f32.mrb[0].mxu0
  %v1423 = vadd.f32 %v1310, %v1422
  %1424 = vmatprep.mubr.bf16.mxu0 %v410
  %1425 = vmatmul.mubr.bf16.gmra.mrb[0].mxu0 %v409
  %v1426 = vpop.f32.mrb[0].mxu0
  %v1427 = vadd.f32 %v1314, %v1426
  %v1428 = vpop.f32.mrb[0].mxu0
  %v1429 = vadd.f32 %v1316, %v1428
  %v1430 = vpop.f32.mrb[0].mxu0
  %v1431 = vadd.f32 %v1318, %v1430
  %v1432 = vpop.f32.mrb[0].mxu0
  %v1433 = vadd.f32 %v1320, %v1432
  %1434 = vmatprep.mubr.bf16.mxu0 %v418
  %1435 = vmatmul.mubr.bf16.gmra.mrb[0].mxu0 %v417
  %v1436 = vpop.f32.mrb[0].mxu0
  %v1437 = vadd.f32 %v1324, %v1436
  %v1438 = vpop.f32.mrb[0].mxu0
  %v1439 = vadd.f32 %v1326, %v1438
  %v1440 = vpop.f32.mrb[0].mxu0
  %v1441 = vadd.f32 %v1328, %v1440
  %v1442 = vpop.f32.mrb[0].mxu0
  %v1443 = vadd.f32 %v1330, %v1442
  %1444 = vmatprep.mubr.bf16.mxu0 %v426
  %1445 = vmatmul.mubr.bf16.gmra.mrb[0].mxu0 %v425
  %v1446 = vpop.f32.mrb[0].mxu0
  %v1447 = vadd.f32 %v1334, %v1446
  %v1448 = vpop.f32.mrb[0].mxu0
  %v1449 = vadd.f32 %v1336, %v1448
  %v1450 = vpop.f32.mrb[0].mxu0
  %v1451 = vadd.f32 %v1338, %v1450
  %v1452 = vpop.f32.mrb[0].mxu0
  %v1453 = vadd.f32 %v1340, %v1452
  %1454 = vmatprep.mubr.bf16.mxu0 %v434
  %1455 = vmatmul.mubr.bf16.gmra.mrb[0].mxu0 %v433
  %v1456 = vpop.f32.mrb[0].mxu0
  %v1457 = vadd.f32 %v1344, %v1456
  %v1458 = vpop.f32.mrb[0].mxu0
  %v1459 = vadd.f32 %v1346, %v1458
  %v1460 = vpop.f32.mrb[0].mxu0
  %v1461 = vadd.f32 %v1348, %v1460
  %v1462 = vpop.f32.mrb[0].mxu0
  %v1463 = vadd.f32 %v1350, %v1462
  %1464 = vmatprep.mubr.bf16.mxu0 %v442
  %1465 = vmatmul.mubr.bf16.gmra.mrb[0].mxu0 %v441
  %v1466 = vpop.f32.mrb[0].mxu0
  %v1467 = vadd.f32 %v1354, %v1466
  %v1468 = vpop.f32.mrb[0].mxu0
  %v1469 = vadd.f32 %v1356, %v1468
  %v1470 = vpop.f32.mrb[0].mxu0
  %v1471 = vadd.f32 %v1358, %v1470
  %v1472 = vpop.f32.mrb[0].mxu0
  %v1473 = vadd.f32 %v1360, %v1472
  %1474 = vmatprep.mubr.bf16.mxu0 %v450
  %1475 = vmatmul.mubr.bf16.gmra.mrb[0].mxu0 %v449
  %v1476 = vpop.f32.mrb[0].mxu0
  %v1477 = vadd.f32 %v1364, %v1476
  %v1478 = vpop.f32.mrb[0].mxu0
  %v1479 = vadd.f32 %v1366, %v1478
  %v1480 = vpop.f32.mrb[0].mxu0
  %v1481 = vadd.f32 %v1368, %v1480
  %v1482 = vpop.f32.mrb[0].mxu0
  %v1483 = vadd.f32 %v1370, %v1482
  %1484 = vdwg.mxu0
  %1485 = vmatprep.subr.bf16.mxu0 %v969
  %1486 = vmatpush1.bf16.msra.mxu0 %v968
  %1487 = vmatprep.subr.bf16.mxu0 %v971
  %1488 = vmatpush1.bf16.msra.mxu0 %v970
  %1489 = vmatprep.subr.bf16.mxu0 %v973
  %1490 = vmatpush1.bf16.msra.mxu0 %v972
  %1491 = vmatprep.subr.bf16.mxu0 %v975
  %1492 = vmatpush1.bf16.msra.mxu0 %v974
  %1493 = vmatprep.subr.bf16.mxu0 %v977
  %1494 = vmatpush1.bf16.msra.mxu0 %v976
  %1495 = vmatprep.subr.bf16.mxu0 %v979
  %1496 = vmatpush1.bf16.msra.mxu0 %v978
  %1497 = vmatprep.subr.bf16.mxu0 %v981
  %1498 = vmatpush1.bf16.msra.mxu0 %v980
  %1499 = vmatprep.subr.bf16.mxu0 %v983
  %1500 = vmatpush1.bf16.msra.mxu0 %v982
  %1501 = vmatprep.subr.bf16.mxu0 %v985
  %1502 = vmatpush1.bf16.msra.mxu0 %v984
  %1503 = vmatprep.subr.bf16.mxu0 %v987
  %1504 = vmatpush1.bf16.msra.mxu0 %v986
  %1505 = vmatprep.subr.bf16.mxu0 %v989
  %1506 = vmatpush1.bf16.msra.mxu0 %v988
  %1507 = vmatprep.subr.bf16.mxu0 %v991
  %1508 = vmatpush1.bf16.msra.mxu0 %v990
  %1509 = vmatprep.subr.bf16.mxu0 %v1144
  %1510 = vmatpush1.bf16.msra.mxu0 %v1141
  %1511 = vmatprep.subr.bf16.mxu0 0
  %1512 = vmatpush1.bf16.msra.mxu0 0
  %1513 = vmatprep.subr.bf16.mxu0 0
  %1514 = vmatpush1.bf16.msra.mxu0 0
  %1515 = vmatprep.subr.bf16.mxu0 0
  %1516 = vmatpush1.bf16.msra.mxu0 0
  %1517 = vmatprep.mubr.bf16.mxu0 %v1116
  %1518 = vmatmul.mubr.bf16.gmra.mrb[0].mxu0 %v395
  %v1519 = vpop.f32.mrb[0].mxu0
  %v1520 = vadd.f32 %v1407, %v1519
  %v1521 = vpop.f32.mrb[0].mxu0
  %v1522 = vadd.f32 %v1409, %v1521
  %v1523 = vpop.f32.mrb[0].mxu0
  %v1524 = vadd.f32 %v1411, %v1523
  %v1525 = vpop.f32.mrb[0].mxu0
  %v1526 = vadd.f32 %v1413, %v1525
  %1527 = vmatprep.mubr.bf16.mxu0 %v1119
  %1528 = vmatmul.mubr.bf16.gmra.mrb[0].mxu0 %v403
  %v1529 = vpop.f32.mrb[0].mxu0
  %v1530 = vadd.f32 %v1417, %v1529
  %v1531 = vpop.f32.mrb[0].mxu0
  %v1532 = vadd.f32 %v1419, %v1531
  %v1533 = vpop.f32.mrb[0].mxu0
  %v1534 = vadd.f32 %v1421, %v1533
  %v1535 = vpop.f32.mrb[0].mxu0
  %v1536 = vadd.f32 %v1423, %v1535
  %1537 = vmatprep.mubr.bf16.mxu0 %v1122
  %1538 = vmatmul.mubr.bf16.gmra.mrb[0].mxu0 %v411
  %v1539 = vpop.f32.mrb[0].mxu0
  %v1540 = vadd.f32 %v1427, %v1539
  %v1541 = vpop.f32.mrb[0].mxu0
  %v1542 = vadd.f32 %v1429, %v1541
  %v1543 = vpop.f32.mrb[0].mxu0
  %v1544 = vadd.f32 %v1431, %v1543
  %v1545 = vpop.f32.mrb[0].mxu0
  %v1546 = vadd.f32 %v1433, %v1545
  %1547 = vmatprep.mubr.bf16.mxu0 %v1125
  %1548 = vmatmul.mubr.bf16.gmra.mrb[0].mxu0 %v419
  %v1549 = vpop.f32.mrb[0].mxu0
  %v1550 = vadd.f32 %v1437, %v1549
  %v1551 = vpop.f32.mrb[0].mxu0
  %v1552 = vadd.f32 %v1439, %v1551
  %v1553 = vpop.f32.mrb[0].mxu0
  %v1554 = vadd.f32 %v1441, %v1553
  %v1555 = vpop.f32.mrb[0].mxu0
  %v1556 = vadd.f32 %v1443, %v1555
  %1557 = vmatprep.mubr.bf16.mxu0 %v1128
  %1558 = vmatmul.mubr.bf16.gmra.mrb[0].mxu0 %v427
  %v1559 = vpop.f32.mrb[0].mxu0
  %v1560 = vadd.f32 %v1447, %v1559
  %v1561 = vpop.f32.mrb[0].mxu0
  %v1562 = vadd.f32 %v1449, %v1561
  %v1563 = vpop.f32.mrb[0].mxu0
  %v1564 = vadd.f32 %v1451, %v1563
  %v1565 = vpop.f32.mrb[0].mxu0
  %v1566 = vadd.f32 %v1453, %v1565
  %1567 = vmatprep.mubr.bf16.mxu0 %v1131
  %1568 = vmatmul.mubr.bf16.gmra.mrb[0].mxu0 %v435
  %v1569 = vpop.f32.mrb[0].mxu0
  %v1570 = vadd.f32 %v1457, %v1569
  %v1571 = vpop.f32.mrb[0].mxu0
  %v1572 = vadd.f32 %v1459, %v1571
  %v1573 = vpop.f32.mrb[0].mxu0
  %v1574 = vadd.f32 %v1461, %v1573
  %v1575 = vpop.f32.mrb[0].mxu0
  %v1576 = vadd.f32 %v1463, %v1575
  %1577 = vmatprep.mubr.bf16.mxu0 %v1134
  %1578 = vmatmul.mubr.bf16.gmra.mrb[0].mxu0 %v443
  %v1579 = vpop.f32.mrb[0].mxu0
  %v1580 = vadd.f32 %v1467, %v1579
  %v1581 = vpop.f32.mrb[0].mxu0
  %v1582 = vadd.f32 %v1469, %v1581
  %v1583 = vpop.f32.mrb[0].mxu0
  %v1584 = vadd.f32 %v1471, %v1583
  %v1585 = vpop.f32.mrb[0].mxu0
  %v1586 = vadd.f32 %v1473, %v1585
  %1587 = vmatprep.mubr.bf16.mxu0 %v1137
  %1588 = vmatmul.mubr.bf16.gmra.mrb[0].mxu0 %v451
  %v1589 = vpop.f32.mrb[0].mxu0
  %v1590 = vadd.f32 %v1477, %v1589
  %v1591 = vpop.f32.mrb[0].mxu0
  %v1592 = vadd.f32 %v1479, %v1591
  %v1593 = vpop.f32.mrb[0].mxu0
  %v1594 = vadd.f32 %v1481, %v1593
  %v1595 = vpop.f32.mrb[0].mxu0
  %v1596 = vadd.f32 %v1483, %v1595
  %1597 = vdwg.mxu0
  %1598 = vst [vmem:[%s2] sm:$0xff] %v1520
  %1599 = vst [vmem:[%s2 + $0x8] sm:$0xff] %v1522
  %1600 = vst [vmem:[%s2 + $0x10] sm:$0xff] %v1524
  %1601 = vst [vmem:[%s2 + $0x18] sm:$0xff] %v1526
  %1602 = vst [vmem:[%s2 + $0x20] sm:$0xff] %v1530
  %1603 = vst [vmem:[%s2 + $0x28] sm:$0xff] %v1532
  %1604 = vst [vmem:[%s2 + $0x30] sm:$0xff] %v1534
  %1605 = vst [vmem:[%s2 + $0x38] sm:$0xff] %v1536
  %1606 = vst [vmem:[%s2 + $0x40] sm:$0xff] %v1540
  %1607 = vst [vmem:[%s2 + $0x48] sm:$0xff] %v1542
  %1608 = vst [vmem:[%s2 + $0x50] sm:$0xff] %v1544
  %1609 = vst [vmem:[%s2 + $0x58] sm:$0xff] %v1546
  %1610 = vst [vmem:[%s2 + $0x60] sm:$0xff] %v1550
  %1611 = vst [vmem:[%s2 + $0x68] sm:$0xff] %v1552
  %1612 = vst [vmem:[%s2 + $0x70] sm:$0xff] %v1554
  %1613 = vst [vmem:[%s2 + $0x78] sm:$0xff] %v1556
  %1614 = vst [vmem:[%s2 + $0x80] sm:$0xff] %v1560
  %1615 = vst [vmem:[%s2 + $0x88] sm:$0xff] %v1562
  %1616 = vst [vmem:[%s2 + $0x90] sm:$0xff] %v1564
  %1617 = vst [vmem:[%s2 + $0x98] sm:$0xff] %v1566
  %1618 = vst [vmem:[%s2 + $0xa0] sm:$0xff] %v1570
  %1619 = vst [vmem:[%s2 + $0xa8] sm:$0xff] %v1572
  %1620 = vst [vmem:[%s2 + $0xb0] sm:$0xff] %v1574
  %1621 = vst [vmem:[%s2 + $0xb8] sm:$0xff] %v1576
  %1622 = vst [vmem:[%s2 + $0xc0] sm:$0xff] %v1580
  %1623 = vst [vmem:[%s2 + $0xc8] sm:$0xff] %v1582
  %1624 = vst [vmem:[%s2 + $0xd0] sm:$0xff] %v1584
  %1625 = vst [vmem:[%s2 + $0xd8] sm:$0xff] %v1586
  %1626 = vst [vmem:[%s2 + $0xe0] sm:$0xff] %v1590
  %1627 = vst [vmem:[%s2 + $0xe8] sm:$0xff] %v1592
  %1628 = vst [vmem:[%s2 + $0xf0] sm:$0xff] %v1594
  %1629 = vst [vmem:[%s2 + $0xf8] sm:$0xff] %v1596
  // Predicated region
  $region10: #{post_processing.1} parent=0 // pred_check
    _
  $region11: #{post_processing.1} parent=0 // pred_check_branch
    %1631 = sbr.rel (0) target = $region13
  $region12: #{post_processing.1} parent=0 // pred_region
    _
  $region13: #{post_processing.1} parent=0 // pred_fallthru
    _
  // Predicated region
  $region14: #{post_processing.1} parent=0 // pred_check
    _
  $region15: #{post_processing.1} parent=0 // pred_check_branch
    %1633 = sbr.rel (0) target = $region17
  $region16: #{post_processing.1} parent=0 // pred_region
    _
  $region17: #{post_processing.1} parent=0 // pred_fallthru
    _

</llo_original>
